<compile_context>
chip_gen: v5e
topology: v5e:2x2
jax: 0.10.0
libtpu: 0.0.40
codegen_flags: <defaults>
</compile_context>

<pallas_src>
import numpy as np
import jax
import jax.numpy as jnp
from jax.experimental import pallas as pl
from jax.experimental.pallas import tpu as pltpu


# ----------------------------------------------------------------------------
# pairs helper: distance_manhattan(n) + get_pairs_within_threshold(dist, d)
# (used only by the numpy reference check; the kernels build the mask densely)
# ----------------------------------------------------------------------------
def _manhattan_pairs(n, d):
    idx = np.arange(n * n)
    a, b = idx // n, idx % n
    dist = np.abs(a[:, None] - a[None, :]) + np.abs(b[:, None] - b[None, :])
    ii, jj = np.nonzero(dist <= d)
    return ii.astype(np.int32), jj.astype(np.int32)


# ----------------------------------------------------------------------------
# Parameter init (PyTorch-default-style uniform) and exact offline fusion.
# ----------------------------------------------------------------------------
def init_params(key):
    ks = jax.random.split(key, 8)

    def unif(k, shape, fan_in):
        bound = 1.0 / np.sqrt(fan_in)
        return jax.random.uniform(k, shape, jnp.float32, -bound, bound)

    wc = unif(ks[0], (2, 1, 3, 3), 9)   # Conv2d(1, 2, 3)
    bc = unif(ks[1], (2,), 9)
    w1 = unif(ks[2], (9, 2), 2)         # Linear(2, 9)
    b1 = unif(ks[3], (9,), 2)
    w2 = unif(ks[4], (9, 9), 9)         # Linear(9, 9)
    b2 = unif(ks[5], (9,), 9)
    w3 = unif(ks[6], (1, 9), 9)         # Linear(9, 1)
    b3 = unif(ks[7], (1,), 9)
    return wc, bc, w1, b1, w2, b2, w3, b3


def fuse_params(params):
    """Fuse conv1+fc1 (exact: no nonlinearity between them in the reference)
    and pack all layers into a (3, 9, 9) weight slab and (3, 9, 1) bias slab
    in (out, in) column form (kernel computes h = W @ x + b)."""
    wc, bc, w1, b1, w2, b2, w3, b3 = params
    wc_flat = wc.reshape(2, 9)                               # conv as dense (2, 9)
    wf = w1 @ wc_flat                                        # (9, 9) fused conv1+fc1
    bf = w1 @ bc + b1                                        # (9,)
    w3p = jnp.zeros((9, 9), jnp.float32).at[0].set(w3[0])    # pad fc3 to (9, 9)
    b3p = jnp.zeros((9,), jnp.float32).at[0].set(b3[0])
    w_slab = jnp.stack([wf, w2, w3p]).astype(jnp.float32)            # (3, 9, 9)
    b_slab = jnp.stack([bf, b2, b3p]).astype(jnp.float32).reshape(3, 9, 1)
    return w_slab, b_slab


# ----------------------------------------------------------------------------
# Pallas kernel 1: per-PIXEL LeNet subnet.
# Input patches are transposed: lanes = pixels, sublanes = 9 flattened patch
# values.  Output row 0 carries relu(fc3) per pixel (lane-dense stores).
# ----------------------------------------------------------------------------
def pixel_subnet_kernel(p_ref, w_ref, b_ref, o_ref):
    x = p_ref[...]                                                   # (9, tp)
    # fused conv1(9->2)+fc1(2->9): no activation between them in the reference
    h = jnp.dot(w_ref[0], x, preferred_element_type=jnp.float32) + b_ref[0]
    # relu(fc2 (9->9))
    h = jnp.maximum(
        jnp.dot(w_ref[1], h, preferred_element_type=jnp.float32) + b_ref[1], 0.0)
    # relu(fc3 (1->9 zero-padded to 9x9)); only row 0 carries the real output
    h = jnp.maximum(
        jnp.dot(w_ref[2], h, preferred_element_type=jnp.float32) + b_ref[2], 0.0)
    o_ref[...] = h[0:1, :]                                           # (1, tp)


def pixel_subnet(patches, w_slab, b_slab, tp_cap=2048):
    """patches: (Np, 9) flattened 3x3 patches, one per pixel. Returns (Np,)."""
    Np = patches.shape[0]
    # Tile sizing (perf review): aim for ~8 grid steps (>=4 per v7x TensorCore)
    # before hitting the 2048-lane cap; a single step for tiny inputs.
    tp = max(128, min(tp_cap, pl.cdiv(pl.cdiv(Np, 8), 128) * 128))
    steps = pl.cdiv(Np, tp)
    if steps > 1 and steps % 2 == 1:
        steps += 1                       # even split across v7x's two cores
    Np_pad = steps * tp

    pt = jnp.pad(patches.astype(jnp.float32), ((0, Np_pad - Np), (0, 0))).T

    out = pl.pallas_call(
        pixel_subnet_kernel,
        out_shape=jax.ShapeDtypeStruct((1, Np_pad), jnp.float32),
        grid=(steps,),
        in_specs=[
            pl.BlockSpec((9, tp), lambda i: (0, i)),
            pl.BlockSpec((3, 9, 9), lambda i: (0, 0, 0)),   # resident weights
            pl.BlockSpec((3, 9, 1), lambda i: (0, 0, 0)),   # resident biases
        ],
        out_specs=pl.BlockSpec((1, tp), lambda i: (0, i)),
        compiler_params=pltpu.CompilerParams(dimension_semantics=("parallel",)),
    )(pt, w_slab, b_slab)
    return out[0, :Np]


# ----------------------------------------------------------------------------
# Pallas kernel 2: fused pair-score matrix + symmetrize + normalized Laplacian.
#   t[k]        : subnet output of the patch at (row = k % n, col = k // n)
#   T2[c, r]    = t[c*n + r]
#   x[i, j]     = mask(i,j) * sigmoid(t[i] * T2[i//n, j%n])      (pair scores)
#   x[j, i]     = mask(i,j) * sigmoid(t[j] * T2[j//n, i%n])
#   s           = 0.5 * (x + x^T),  deg = rowsum(s) > 0
#   L           = D^{-1/2} s D^{-1/2}  ==  I - D^{-1/2}(D - s)D^{-1/2}
# The [i//n, j%n] / [j//n, i%n] gathers are realised as small one-hot matmuls
# (N,n)@(n,n)@(n,N), so no (N,N) transpose / gather is needed in-kernel.
# ----------------------------------------------------------------------------
def _make_score_laplacian_kernel(d):
    d_f = float(d)

    def kernel(tcol_ref, trow_ref, t2_ref, t2t_ref,
               oc_ref, orw_ref, oct_ref, orwt_ref,
               pi_ref, pj_ref, o_ref):
        f32 = jnp.float32
        # B[i, j]  = T2[i//n, j%n]    BT[i, j] = T2[j//n, i%n]
        b_mat = jnp.dot(
            oc_ref[...],
            jnp.dot(t2_ref[...], orwt_ref[...], preferred_element_type=f32),
            preferred_element_type=f32)
        bt_mat = jnp.dot(
            orw_ref[...],
            jnp.dot(t2t_ref[...], oct_ref[...], preferred_element_type=f32),
            preferred_element_type=f32)
        x_fwd = jax.nn.sigmoid(tcol_ref[...] * b_mat)     # x[i, j]
        x_bwd = jax.nn.sigmoid(trow_ref[...] * bt_mat)    # x[j, i]

        # Manhattan-distance mask from pixel coordinates (small exact f32 ints)
        dist = (jnp.abs(pi_ref[:, 0:1] - pj_ref[0:1, :]) +
                jnp.abs(pi_ref[:, 1:2] - pj_ref[1:2, :]))
        s = jnp.where(dist <= d_f, 0.5 * (x_fwd + x_bwd), 0.0)

        rsum = jnp.sum(s, axis=1, keepdims=True)          # (N, 1), > 0
        csum = jnp.sum(s, axis=0, keepdims=True)          # (1, N) == rsum.T
        o_ref[...] = s * jax.lax.rsqrt(rsum) * jax.lax.rsqrt(csum)

    return kernel


def fused_score_laplacian(t, n, d, vmem_limit_bytes=48 * 1024 * 1024):
    """t: (N,) per-pixel subnet outputs (pixel k <-> row=k%n, col=k//n).
    Returns the (N, N) normalized Laplacian in one pallas_call."""
    N = n * n
    t = t.astype(jnp.float32)
    t_col = t.reshape(N, 1)
    t_row = t.reshape(1, N)
    t2 = t.reshape(n, n)                                   # T2[c, r]
    t2t = t2.T

    k = np.arange(N)
    ci = (k // n).astype(np.float32)
    ri = (k % n).astype(np.float32)
    oc = (ci[:, None] == np.arange(n)[None, :]).astype(np.float32)   # (N, n)
    orw = (ri[:, None] == np.arange(n)[None, :]).astype(np.float32)  # (N, n)
    pi = np.stack([ci, ri], axis=1)                         # (N, 2)
    pj = np.stack([ci, ri], axis=0)                         # (2, N)

    args = (t_col, t_row, t2, t2t,
            jnp.asarray(oc), jnp.asarray(orw),
            jnp.asarray(np.ascontiguousarray(oc.T)),
            jnp.asarray(np.ascontiguousarray(orw.T)),
            jnp.asarray(pi), jnp.asarray(pj))

    full2d = lambda shape: pl.BlockSpec(tuple(shape), lambda: (0, 0))
    return pl.pallas_call(
        _make_score_laplacian_kernel(d),
        out_shape=jax.ShapeDtypeStruct((N, N), jnp.float32),
        in_specs=[full2d(a.shape) for a in args],
        out_specs=full2d((N, N)),
        compiler_params=pltpu.CompilerParams(
            vmem_limit_bytes=vmem_limit_bytes),
    )(*args)


# ----------------------------------------------------------------------------
# MatrixNet forward
# ----------------------------------------------------------------------------
def matrixnet_laplacian(image, params, d=1):
    n = image.shape[0]
    N = n * n
    # Per-pixel 3x3 patches (zero-padded borders), pixel k <-> (row=k%n, col=k//n).
    # The subnet runs once per PIXEL; pair scores are rebuilt in kernel 2.
    padded = jnp.pad(image.astype(jnp.float32), 1)
    k = np.arange(N)
    rows = jnp.asarray(k % n)
    cols = jnp.asarray(k // n)
    r = rows[:, None, None] + jnp.arange(3)[None, :, None]
    c = cols[:, None, None] + jnp.arange(3)[None, None, :]
    patches = padded[r, c].reshape(N, 9)

    w_slab, b_slab = fuse_params(params)
    t = pixel_subnet(patches, w_slab, b_slab)         # Pallas kernel 1, (N,)
    return fused_score_laplacian(t, n, d)             # Pallas kernel 2, (N, N)


def matrixnet_forward(image, params, d=1):
    n = image.shape[0]
    L = matrixnet_laplacian(image, params, d)
    # TODO(synk): eigen-decomposition has no Pallas equivalent; use XLA's eigh.
    _, Y = jnp.linalg.eigh(L[None], UPLO='U', symmetrize_input=False)
    y = Y[:, 1, :]                      # NC: row 1, exactly as in the reference
    signs = jnp.sign(y[:, 0])[:, None]  # sign(0)=0 kept to match the reference
    return y * signs                    # (1, n*n)


# ----------------------------------------------------------------------------
# float64 numpy reference of the ORIGINAL per-pair formulation (pre-eigh),
# used as a correctness check of the fused kernels.
# ----------------------------------------------------------------------------
def _reference_laplacian_np(image, params, d):
    n = image.shape[0]
    N = n * n
    wc, bc, w1, b1, w2, b2, w3, b3 = [np.asarray(p, np.float64) for p in params]
    padded = np.pad(np.asarray(image, np.float64), 1)

    def subnet(rows, cols):
        out = np.zeros(len(rows))
        for t, (r, c) in enumerate(zip(rows, cols)):
            p = padded[r:r + 3, c:c + 3].reshape(9)
            h = wc.reshape(2, 9) @ p + bc
            h = w1 @ h + b1
            h = np.maximum(w2 @ h + b2, 0.0)
            h = np.maximum(w3 @ h + b3, 0.0)
            out[t] = h[0]
        return out

    ii, jj = _manhattan_pairs(n, d)
    o1 = subnet(ii % n, ii // n)
    o2 = subnet(jj % n, ii // n)        # patch2 column reuses i//n (as in torch)
    scores = 1.0 / (1.0 + np.exp(-(o1 * o2)))
    x = np.zeros((N, N))
    x[ii, jj] = scores
    s = 0.5 * (x + x.T)
    deg = s.sum(axis=1)
    dinv = 1.0 / np.sqrt(deg)
    return np.eye(N) - dinv[:, None] * (np.diag(deg) - s) * dinv[None, :]


if __name__ == "__main__":
    n = 8
    key = jax.random.PRNGKey(0)
    k_img, k_par = jax.random.split(key)
    image = jax.random.normal(k_img, (n, n), jnp.float32)
    params = init_params(k_par)

    # Correctness check of the two fused Pallas kernels against the per-pair
    # float64 numpy reference (pre-eigh; deterministic). Loose tolerance to
    # allow for MXU matmul precision.
    L = matrixnet_laplacian(image, params, d=1)
    jax.block_until_ready(L)
    L_ref = _reference_laplacian_np(np.asarray(image), params, d=1)
    max_err = float(np.max(np.abs(np.asarray(L, np.float64) - L_ref)))
    assert max_err < 2e-2, f"Laplacian mismatch: max abs err = {max_err}"

    out = matrixnet_forward(image, params, d=1)
    jax.block_until_ready(out)
    assert out.shape == (1, n * n)
    assert bool(jnp.all(jnp.isfinite(out)))
    print("KERNEL_OK")
</pallas_src>

<mosaic_0001>
module attributes {stable_mosaic.version = 11 : i64} {
  func.func @pixel_subnet_kernel(%arg0: i32, %arg1: memref<9x128xf32, #tpu.memory_space<vmem>>, %arg2: memref<3x9x9xf32, #tpu.memory_space<vmem>>, %arg3: memref<3x9x1xf32, #tpu.memory_space<vmem>>, %arg4: memref<1x128xf32, #tpu.memory_space<vmem>>) attributes {dimension_semantics = [#tpu.dimension_semantics<parallel>], iteration_bounds = array<i64: 1>, scalar_prefetch = 0 : i64, scratch_operands = 0 : i64, tpu.core_type = #tpu.core_type<tc>, window_params = [{transform_indices = @transform_0, window_bounds = array<i64: 9, 128>}, {pipeline_mode = #tpu.pipeline_mode<synchronous>, transform_indices = @transform_1, window_bounds = array<i64: 3, 9, 9>}, {pipeline_mode = #tpu.pipeline_mode<synchronous>, transform_indices = @transform_2, window_bounds = array<i64: 3, 9, 1>}, {transform_indices = @transform_3, window_bounds = array<i64: 1, 128>}]} {
    %c0 = arith.constant 0 : index
    %c0_0 = arith.constant 0 : index
    %0 = vector.load %arg1[%c0, %c0_0] : memref<9x128xf32, #tpu.memory_space<vmem>>, vector<9x128xf32>
    %c0_1 = arith.constant 0 : index
    %c0_2 = arith.constant 0 : index
    %c0_3 = arith.constant 0 : index
    %1 = vector.load %arg2[%c0_1, %c0_2, %c0_3] : memref<3x9x9xf32, #tpu.memory_space<vmem>>, vector<1x9x9xf32>
    %2 = vector.shape_cast %1 : vector<1x9x9xf32> to vector<9x9xf32>
    %cst = arith.constant dense<0.000000e+00> : vector<9x128xf32>
    %3 = tpu.matmul %2, %0, %cst {dimension_numbers = #tpu.dot_dimension_numbers<[1], [0], [0], [1], [0, 0, 1, 1], [], []>} : vector<9x9xf32>, vector<9x128xf32>, vector<9x128xf32> -> vector<9x128xf32>
    %c0_4 = arith.constant 0 : index
    %c0_5 = arith.constant 0 : index
    %c0_6 = arith.constant 0 : index
    %4 = vector.load %arg3[%c0_4, %c0_5, %c0_6] : memref<3x9x1xf32, #tpu.memory_space<vmem>>, vector<1x9x1xf32>
    %5 = vector.shape_cast %4 : vector<1x9x1xf32> to vector<9x1xf32>
    %6 = vector.broadcast %5 : vector<9x1xf32> to vector<9x128xf32>
    %7 = arith.addf %3, %6 : vector<9x128xf32>
    %c1 = arith.constant 1 : index
    %c0_7 = arith.constant 0 : index
    %c0_8 = arith.constant 0 : index
    %8 = vector.load %arg2[%c1, %c0_7, %c0_8] : memref<3x9x9xf32, #tpu.memory_space<vmem>>, vector<1x9x9xf32>
    %9 = vector.shape_cast %8 : vector<1x9x9xf32> to vector<9x9xf32>
    %cst_9 = arith.constant dense<0.000000e+00> : vector<9x128xf32>
    %10 = tpu.matmul %9, %7, %cst_9 {dimension_numbers = #tpu.dot_dimension_numbers<[1], [0], [0], [1], [0, 0, 1, 1], [], []>} : vector<9x9xf32>, vector<9x128xf32>, vector<9x128xf32> -> vector<9x128xf32>
    %c1_10 = arith.constant 1 : index
    %c0_11 = arith.constant 0 : index
    %c0_12 = arith.constant 0 : index
    %11 = vector.load %arg3[%c1_10, %c0_11, %c0_12] : memref<3x9x1xf32, #tpu.memory_space<vmem>>, vector<1x9x1xf32>
    %12 = vector.shape_cast %11 : vector<1x9x1xf32> to vector<9x1xf32>
    %13 = vector.broadcast %12 : vector<9x1xf32> to vector<9x128xf32>
    %14 = arith.addf %10, %13 : vector<9x128xf32>
    %cst_13 = arith.constant 0.000000e+00 : f32
    %15 = vector.broadcast %cst_13 : f32 to vector<9x128xf32>
    %16 = arith.maximumf %14, %15 : vector<9x128xf32>
    %c2 = arith.constant 2 : index
    %c0_14 = arith.constant 0 : index
    %c0_15 = arith.constant 0 : index
    %17 = vector.load %arg2[%c2, %c0_14, %c0_15] : memref<3x9x9xf32, #tpu.memory_space<vmem>>, vector<1x9x9xf32>
    %18 = vector.shape_cast %17 : vector<1x9x9xf32> to vector<9x9xf32>
    %cst_16 = arith.constant dense<0.000000e+00> : vector<9x128xf32>
    %19 = tpu.matmul %18, %16, %cst_16 {dimension_numbers = #tpu.dot_dimension_numbers<[1], [0], [0], [1], [0, 0, 1, 1], [], []>} : vector<9x9xf32>, vector<9x128xf32>, vector<9x128xf32> -> vector<9x128xf32>
    %c2_17 = arith.constant 2 : index
    %c0_18 = arith.constant 0 : index
    %c0_19 = arith.constant 0 : index
    %20 = vector.load %arg3[%c2_17, %c0_18, %c0_19] : memref<3x9x1xf32, #tpu.memory_space<vmem>>, vector<1x9x1xf32>
    %21 = vector.shape_cast %20 : vector<1x9x1xf32> to vector<9x1xf32>
    %22 = vector.broadcast %21 : vector<9x1xf32> to vector<9x128xf32>
    %23 = arith.addf %19, %22 : vector<9x128xf32>
    %cst_20 = arith.constant 0.000000e+00 : f32
    %24 = vector.broadcast %cst_20 : f32 to vector<9x128xf32>
    %25 = arith.maximumf %23, %24 : vector<9x128xf32>
    %26 = vector.extract_strided_slice %25 {offsets = [0, 0], sizes = [1, 128], strides = [1, 1]} : vector<9x128xf32> to vector<1x128xf32>
    %c0_21 = arith.constant 0 : index
    %c0_22 = arith.constant 0 : index
    %27 = vector.load %arg4[%c0_21, %c0_22] : memref<1x128xf32, #tpu.memory_space<vmem>>, vector<1x128xf32>
    tpu.vector_store %arg4[%c0_21, %c0_22], %26 {strides = array<i32>} : memref<1x128xf32, #tpu.memory_space<vmem>>, vector<1x128xf32>,
    return
  }
  func.func @transform_0(%arg0: i32) -> (i32, i32) {
    %c0_i32 = arith.constant 0 : i32
    %c0_i32_0 = arith.constant 0 : i32
    return %c0_i32, %arg0 : i32, i32
  }
  func.func @transform_1(%arg0: i32) -> (i32, i32, i32) {
    %c0_i32 = arith.constant 0 : i32
    %c0_i32_0 = arith.constant 0 : i32
    %c0_i32_1 = arith.constant 0 : i32
    %c0_i32_2 = arith.constant 0 : i32
    return %c0_i32, %c0_i32_0, %c0_i32_1 : i32, i32, i32
  }
  func.func @transform_2(%arg0: i32) -> (i32, i32, i32) {
    %c0_i32 = arith.constant 0 : i32
    %c0_i32_0 = arith.constant 0 : i32
    %c0_i32_1 = arith.constant 0 : i32
    %c0_i32_2 = arith.constant 0 : i32
    return %c0_i32, %c0_i32_0, %c0_i32_1 : i32, i32, i32
  }
  func.func @transform_3(%arg0: i32) -> (i32, i32) {
    %c0_i32 = arith.constant 0 : i32
    %c0_i32_0 = arith.constant 0 : i32
    return %c0_i32, %arg0 : i32, i32
  }
}

</mosaic_0001>

<llo_original>
// kernel: tpu_custom_call.1
$region0: #{tpu_custom_call.1}
  #allocation0 [shape = 'u32[]', space=smem, size = 0x4, offset = 0x4, fixed_abs, tag = 'smem constant byte address 0x4 - core index']
  #allocation1 [shape = 'u32[72,128]{1,0:T(1,128)}', space=vmem, size = 0x9000, scoped, tag = 'internal scratch']
  %s0 = inlined_call_operand.vmem [shape: f32[9,128], index: 0, kind: input, shape index: {}]
  %s1 = inlined_call_operand.vmem [shape: f32[3,9,9], index: 1, kind: input, shape index: {}]
  %s2 = inlined_call_operand.vmem [shape: f32[3,9,1], index: 2, kind: input, shape index: {}]
  %s3 = inlined_call_operand.hbm [shape: f32[1,128], index: 3, kind: output, shape index: {}]
  %s4 = sld [smem:[#allocation0]]
  $region22: #{tpu_custom_call.1} parent=0
    _
  %s6 = ssub.s32 1, %s4
  %s7 = scalar_select 0, %s6, %s4
  $region1: #{tpu_custom_call.1} parent=0
    #allocation2 [shape = 'u8[512]{0}', space=vmem, size = 0x400, scoped, tag = 'output window, operand 0, single buffered']
    #allocation3 [shape = 's32[1]{0}', space=sflag, size = 0x4, scoped, tag = 'scoped memory for tpu_custom_call.1']
    %8 = vsyncpa [#allocation3], 0
    // Predicated region
    $region2: #{tpu_custom_call.1} parent=1 // pred_check
      _
    $region3: #{tpu_custom_call.1} parent=1 // pred_check_branch
      %10 = sbr.rel (0) target = $region5
    $region4: #{tpu_custom_call.1} parent=1 // pred_region
      _
    $region5: #{tpu_custom_call.1} parent=1 // pred_fallthru
      _
    // Predicated region
    $region6: #{tpu_custom_call.1} parent=1 // pred_check
      _
    $region7: #{tpu_custom_call.1} parent=1 // pred_check_branch
      %12 = sbr.rel (0) target = $region9
    $region8: #{tpu_custom_call.1} parent=1 // pred_region
      _
    $region9: #{tpu_custom_call.1} parent=1 // pred_fallthru
      _
    // Predicated region
    $region10: #{tpu_custom_call.1} parent=1 // pred_check
      _
    $region11: #{tpu_custom_call.1} parent=1 // pred_check_branch
      %14 = sbr.rel (0) target = $region13
    $region12: #{tpu_custom_call.1} parent=1 // pred_region
      _
    $region13: #{tpu_custom_call.1} parent=1 // pred_fallthru
      _
    %v15 = vld [vmem:[%s0] sm:$0xff]
    %v16 = vld [vmem:[%s0 + $0x8] sm:$0x1]
    %v17 = vld [vmem:[%s1] sm:$0xff]
    %v18 = vld [vmem:[%s1 + $0x8] sm:$0x1]
    %v19 = vld [vmem:[%s2] sm:$0xff]
    %v20 = vld [vmem:[%s2 + $0x8] sm:$0x1]
    %22 = vset.pattern.permute.xlu0 0
    %23 = vperm.xlu0 %22, %v19
    %v24 = vpop.permute.xlu0 %23
    %27 = vset.pattern.permute.xlu0 0
    %28 = vperm.xlu0 %27, %v20
    %v29 = vpop.permute.xlu0 %28
    %vm31 = vcmask 72704
    %v33 = vsel %vm31, %v17, 0
    %v36 = vsel %vm31, %v18, 0
    %vm38 = vcmask 1040384
    %v40 = vsel %vm38, %v16, 0
    %42 = vmatpush.msra.mxu0 0.0
    %43 = vmatpush.msra.mxu0 0.0
    %44 = vmatpush.msra.mxu0 0.0
    %45 = vmatpush.msra.mxu0 0.0
    %46 = vmatpush.msra.mxu0 0.0
    %47 = vmatpush.msra.mxu0 0.0
    %48 = vmatpush.msra.mxu0 0.0
    %49 = vmatpush.msra.mxu0 0.0
    %50 = vmatpush.msra.mxu0 0.0
    %51 = vmatpush.msra.mxu0 0.0
    %52 = vmatpush.msra.mxu0 0.0
    %53 = vmatpush.msra.mxu0 0.0
    %54 = vmatpush.msra.mxu0 0.0
    %55 = vmatpush.msra.mxu0 0.0
    %56 = vmatpush.msra.mxu0 %v40
    %57 = vmatpush.msra.mxu0 %v15
    %58 = vmatmul.f32.gmra.mxu0 %v33
    %v59 = vpop.f32.mrf.mxu0
    %v60 = vadd.f32 %v24, %v59
    %61 = vmatmul.f32.gmra.mxu0 %v36
    %v62 = vpop.f32.mrf.mxu0
    %v63 = vadd.f32 %v29, %v62
    %64 = vdwg.mxu0
    %s65 = scalar_lea.vmem %s1, 16
    %v66 = vld [vmem:[%s65] sm:$0xff]
    %v67 = vld [vmem:[%s65 + $0x8] sm:$0x1]
    %s68 = scalar_lea.vmem %s2, 16
    %v69 = vld [vmem:[%s68] sm:$0xff]
    %v70 = vld [vmem:[%s68 + $0x8] sm:$0x1]
    %72 = vset.pattern.permute.xlu0 0
    %73 = vperm.xlu0 %72, %v69
    %v74 = vpop.permute.xlu0 %73
    %77 = vset.pattern.permute.xlu0 0
    %78 = vperm.xlu0 %77, %v70
    %v79 = vpop.permute.xlu0 %78
    %v82 = vsel %vm31, %v66, 0
    %v85 = vsel %vm31, %v67, 0
    %v88 = vsel %vm38, %v63, 0
    %90 = vmatpush.msra.mxu0 0.0
    %91 = vmatpush.msra.mxu0 0.0
    %92 = vmatpush.msra.mxu0 0.0
    %93 = vmatpush.msra.mxu0 0.0
    %94 = vmatpush.msra.mxu0 0.0
    %95 = vmatpush.msra.mxu0 0.0
    %96 = vmatpush.msra.mxu0 0.0
    %97 = vmatpush.msra.mxu0 0.0
    %98 = vmatpush.msra.mxu0 0.0
    %99 = vmatpush.msra.mxu0 0.0
    %100 = vmatpush.msra.mxu0 0.0
    %101 = vmatpush.msra.mxu0 0.0
    %102 = vmatpush.msra.mxu0 0.0
    %103 = vmatpush.msra.mxu0 0.0
    %104 = vmatpush.msra.mxu0 %v88
    %105 = vmatpush.msra.mxu0 %v60
    %106 = vmatmul.f32.gmra.mxu0 %v82
    %v107 = vpop.f32.mrf.mxu0
    %v108 = vadd.f32 %v74, %v107
    %109 = vmatmul.f32.gmra.mxu0 %v85
    %v110 = vpop.f32.mrf.mxu0
    %v111 = vadd.f32 %v79, %v110
    %112 = vdwg.mxu0
    %v113 = vmax.f32 %v108, 0.0
    %v114 = vmax.f32 %v111, 0.0
    %s115 = scalar_lea.vmem %s1, 32
    %v116 = vld [vmem:[%s115] sm:$0xff]
    %v117 = vld [vmem:[%s115 + $0x8] sm:$0x1]
    %s118 = scalar_lea.vmem %s2, 32
    %v119 = vld [vmem:[%s118] sm:$0xff]
    %v120 = vld [vmem:[%s118 + $0x8] sm:$0x1]
    %122 = vset.pattern.permute.xlu0 0
    %123 = vperm.xlu0 %122, %v119
    %v124 = vpop.permute.xlu0 %123
    %127 = vset.pattern.permute.xlu0 0
    %128 = vperm.xlu0 %127, %v120
    %v129 = vpop.permute.xlu0 %128
    %v131 = vsel %vm31, %v116, 0
    %v134 = vsel %vm31, %v117, 0
    %v137 = vsel %vm38, %v114, 0
    %139 = vmatpush.msra.mxu0 0.0
    %140 = vmatpush.msra.mxu0 0.0
    %141 = vmatpush.msra.mxu0 0.0
    %142 = vmatpush.msra.mxu0 0.0
    %143 = vmatpush.msra.mxu0 0.0
    %144 = vmatpush.msra.mxu0 0.0
    %145 = vmatpush.msra.mxu0 0.0
    %146 = vmatpush.msra.mxu0 0.0
    %147 = vmatpush.msra.mxu0 0.0
    %148 = vmatpush.msra.mxu0 0.0
    %149 = vmatpush.msra.mxu0 0.0
    %150 = vmatpush.msra.mxu0 0.0
    %151 = vmatpush.msra.mxu0 0.0
    %152 = vmatpush.msra.mxu0 0.0
    %153 = vmatpush.msra.mxu0 %v137
    %154 = vmatpush.msra.mxu0 %v113
    %155 = vmatmul.f32.gmra.mxu0 %v131
    %v156 = vpop.f32.mrf.mxu0
    %v157 = vadd.f32 %v124, %v156
    %158 = vmatmul.f32.gmra.mxu0 %v134
    %v159 = vpop.f32.mrf.mxu0
    %160 = vdwg.mxu0
    %v161 = vmax.f32 %v157, 0.0
    %162 = vst [vmem:[#allocation2] sm:$0x1] %v161
    // Predicated region
    $region14: #{tpu_custom_call.1} parent=1 // pred_check
      _
    $region15: #{tpu_custom_call.1} parent=1 // pred_check_branch
      %164 = sbr.rel (0) target = $region17
    $region16: #{tpu_custom_call.1} parent=1 // pred_region
      %166 = vsyncadd [#allocation3], 0
      %s168 = sshll.u32 [#allocation2], 4
      %s169 = int_to_ptr.vmem [resolvable:$true] %s168
      %s170 = sshll.u32 %s3, 4
      %s171 = int_to_ptr.hbm [resolvable:$true] %s170
      %173 = dma.vmem_to_hbm [thread:$0]  %s169, 16, %s171, [#allocation3]
    $region17: #{tpu_custom_call.1} parent=1 // pred_fallthru
      _
    // Predicated region
    $region18: #{tpu_custom_call.1} parent=1 // pred_check
      _
    $region19: #{tpu_custom_call.1} parent=1 // pred_check_branch
      %175 = sbr.rel (0) target = $region21
    $region20: #{tpu_custom_call.1} parent=1 // pred_region
      %177 = dma.done [#allocation3], 16
    $region21: #{tpu_custom_call.1} parent=1 // pred_fallthru
      _
    %178 = vsyncpa [#allocation3], 1

</llo_original>
